<compile_context>
chip_gen: v7x
topology: tpu7x:2x2x1
jax: 0.10.0
libtpu: 0.0.40
codegen_flags: <defaults>
</compile_context>

<pallas_src>
import functools
import math

import jax
import jax.numpy as jnp
from jax.experimental import pallas as pl
from jax.experimental.pallas import tpu as pltpu

LN_EPS = 1e-5  # PyTorch nn.LayerNorm default


def _round_up(v, m):
    return (v + m - 1) // m * m


def _default_tm(m_rows):
    """Row-tile size: multiple of 8, >=2 grid steps when batch allows, <=256."""
    m8 = _round_up(max(int(m_rows), 1), 8)
    if m8 <= 16:
        return m8
    if m8 <= 512:
        return _round_up((m8 + 1) // 2, 8)   # split across 2 grid steps (dual-TC v7x)
    return 256


def pooler_kernel(x_ref, g_ref, b_ref, w_ref, c_ref, o_ref, *, d_in_real):
    x = x_ref[...].astype(jnp.float32)                     # (tm, D_in_pad)

    # LayerNorm over the real feature count; padded lanes are zero so the
    # sum / sum-of-squares reductions are unaffected by the padding.
    inv_d = jnp.float32(1.0 / d_in_real)
    s1 = jnp.sum(x, axis=-1, keepdims=True)
    s2 = jnp.sum(x * x, axis=-1, keepdims=True)
    mu = s1 * inv_d
    var = jnp.maximum(s2 * inv_d - mu * mu, 0.0)
    xn = (x - mu) * jax.lax.rsqrt(var + LN_EPS)
    xn = xn * g_ref[...] + b_ref[...]                      # padded lanes -> exactly 0

    # Linear: bf16 into the MXU, f32 accumulation (padded W rows/cols are zero).
    y = jnp.dot(xn.astype(jnp.bfloat16), w_ref[...],
                preferred_element_type=jnp.float32) + c_ref[...]

    # nn.Tanh() — single EUP op.
    o_ref[...] = jnp.tanh(y).astype(o_ref.dtype)


def prepare_pooler_params(gamma, beta, weight, bias):
    """One-time prep (keeps the per-call path clean): pad features to 128 lanes,
    transpose the Linear weight, cast the matmul weight to bf16.
    PyTorch conventions: gamma/beta: (D_in,), weight: (D_out, D_in), bias: (D_out,)."""
    d_in = gamma.shape[0]
    d_out = weight.shape[0]
    d_in_p = _round_up(d_in, 128)
    d_out_p = _round_up(d_out, 128)

    g = jnp.zeros((1, d_in_p), jnp.float32).at[0, :d_in].set(gamma.astype(jnp.float32))
    b = jnp.zeros((1, d_in_p), jnp.float32).at[0, :d_in].set(beta.astype(jnp.float32))
    w = jnp.zeros((d_in_p, d_out_p), jnp.bfloat16).at[:d_in, :d_out].set(
        weight.T.astype(jnp.bfloat16))
    c = jnp.zeros((1, d_out_p), jnp.float32).at[0, :d_out].set(bias.astype(jnp.float32))
    return g, b, w, c


@functools.partial(jax.jit, static_argnames=("d_in", "d_out", "tm"))
def pooler_forward(x, gamma_p, beta_p, w_p, bias_p, *, d_in, d_out, tm=None):
    """x: (B, S, d_in). Returns (B, d_out) = tanh(LayerNorm(x[:, 0, :]) @ W.T + b)."""
    B = x.shape[0]
    d_in_p = gamma_p.shape[-1]
    d_out_p = bias_p.shape[-1]

    if tm is None:
        tm = _default_tm(B)
    grid_m = pl.cdiv(B, tm)
    m_pad = grid_m * tm

    # CLS token, padded lane-dense (rows to tile multiple, features to 128).
    cls = x[:, 0, :]
    cls_p = jnp.zeros((m_pad, d_in_p), x.dtype).at[:B, :d_in].set(cls)

    # Explicit VMEM budget (v5e default scoped limit is only 16 MiB; cap at
    # 64 MiB so the request also fits v7x's 64 MiB physical VMEM).
    itemsize = jnp.dtype(x.dtype).itemsize
    need = (2 * tm * d_in_p * itemsize          # x tile (double-buffered)
            + 2 * tm * d_out_p * itemsize       # out tile (double-buffered)
            + d_in_p * d_out_p * 2              # bf16 weight (resident)
            + (2 * d_in_p + d_out_p) * 4)       # gamma / beta / bias
    vmem_limit = int(min(max(4 * need, 16 * 2**20), 64 * 2**20))

    kernel = functools.partial(pooler_kernel, d_in_real=float(d_in))
    const = lambda shape: pl.BlockSpec(shape, lambda i: (0,) * len(shape))

    out = pl.pallas_call(
        kernel,
        out_shape=jax.ShapeDtypeStruct((m_pad, d_out_p), x.dtype),
        grid_spec=pltpu.PrefetchScalarGridSpec(
            num_scalar_prefetch=0,
            grid=(grid_m,),
            in_specs=[
                pl.BlockSpec((tm, d_in_p), lambda i: (i, 0)),   # CLS rows tile
                const((1, d_in_p)),                             # LayerNorm gamma
                const((1, d_in_p)),                             # LayerNorm beta
                const((d_in_p, d_out_p)),                       # W^T (bf16)
                const((1, d_out_p)),                            # Linear bias
            ],
            out_specs=pl.BlockSpec((tm, d_out_p), lambda i: (i, 0)),
        ),
        compiler_params=pltpu.CompilerParams(
            dimension_semantics=("parallel",),
            vmem_limit_bytes=vmem_limit,
        ),
    )(cls_p, gamma_p, beta_p, w_p, bias_p)

    return out[:B, :d_out]


def reference(x, gamma, beta, weight, bias):
    cls = x[:, 0, :].astype(jnp.float32)
    mu = jnp.mean(cls, axis=-1, keepdims=True)
    var = jnp.mean((cls - mu) ** 2, axis=-1, keepdims=True)
    h = (cls - mu) * jax.lax.rsqrt(var + LN_EPS) * gamma + beta
    return jnp.tanh(h @ weight.T + bias)


if __name__ == "__main__":
    key = jax.random.PRNGKey(0)
    kx, kg, kb, kw, kc = jax.random.split(key, 5)

    B, S = 2, 8
    in_features, out_features = 32, 16

    x = jax.random.normal(kx, (B, S, in_features), jnp.float32)

    # nn.LayerNorm params (randomized to exercise scale/shift) + nn.Linear-style init.
    gamma = 1.0 + 0.1 * jax.random.normal(kg, (in_features,), jnp.float32)
    beta = 0.1 * jax.random.normal(kb, (in_features,), jnp.float32)
    bound = 1.0 / math.sqrt(in_features)
    weight = jax.random.uniform(kw, (out_features, in_features), jnp.float32, -bound, bound)
    bias = jax.random.uniform(kc, (out_features,), jnp.float32, -bound, bound)

    gamma_p, beta_p, w_p, bias_p = prepare_pooler_params(gamma, beta, weight, bias)

    y = pooler_forward(x, gamma_p, beta_p, w_p, bias_p,
                       d_in=in_features, d_out=out_features)
    y = jax.block_until_ready(y)

    y_ref = reference(x, gamma, beta, weight, bias)
    assert y.shape == (B, out_features)
    # bf16 matmul (f32 accumulation) vs f32 reference -> slightly relaxed tolerance.
    assert jnp.allclose(y, y_ref, atol=1e-2, rtol=1e-2), "mismatch vs reference"

    print("KERNEL_OK")
</pallas_src>

<mosaic_0001>
module attributes {stable_mosaic.version = 11 : i64} {
  func.func @pooler_kernel(%arg0: i32, %arg1: memref<8x128xf32, #tpu.memory_space<vmem>>, %arg2: memref<1x128xf32, #tpu.memory_space<vmem>>, %arg3: memref<1x128xf32, #tpu.memory_space<vmem>>, %arg4: memref<128x128xbf16, #tpu.memory_space<vmem>>, %arg5: memref<1x128xf32, #tpu.memory_space<vmem>>, %arg6: memref<8x128xf32, #tpu.memory_space<vmem>>) attributes {dimension_semantics = [#tpu.dimension_semantics<parallel>], iteration_bounds = array<i64: 1>, scalar_prefetch = 0 : i64, scratch_operands = 0 : i64, tpu.core_type = #tpu.core_type<tc>, window_params = [{transform_indices = @transform_0, window_bounds = array<i64: 8, 128>}, {pipeline_mode = #tpu.pipeline_mode<synchronous>, transform_indices = @transform_1, window_bounds = array<i64: 1, 128>}, {pipeline_mode = #tpu.pipeline_mode<synchronous>, transform_indices = @transform_2, window_bounds = array<i64: 1, 128>}, {pipeline_mode = #tpu.pipeline_mode<synchronous>, transform_indices = @transform_3, window_bounds = array<i64: 128, 128>}, {pipeline_mode = #tpu.pipeline_mode<synchronous>, transform_indices = @transform_4, window_bounds = array<i64: 1, 128>}, {transform_indices = @transform_5, window_bounds = array<i64: 8, 128>}]} {
    %c0 = arith.constant 0 : index
    %c0_0 = arith.constant 0 : index
    %0 = vector.load %arg1[%c0, %c0_0] : memref<8x128xf32, #tpu.memory_space<vmem>>, vector<8x128xf32>
    %cst = arith.constant dense<0.000000e+00> : vector<8xf32>
    %1 = vector.multi_reduction <add>, %0, %cst [1] : vector<8x128xf32> to vector<8xf32>
    %2 = vector.shape_cast %1 : vector<8xf32> to vector<8x1xf32>
    %3 = arith.mulf %0, %0 : vector<8x128xf32>
    %cst_1 = arith.constant dense<0.000000e+00> : vector<8xf32>
    %4 = vector.multi_reduction <add>, %3, %cst_1 [1] : vector<8x128xf32> to vector<8xf32>
    %5 = vector.shape_cast %4 : vector<8xf32> to vector<8x1xf32>
    %cst_2 = arith.constant 3.125000e-02 : f32
    %6 = vector.broadcast %cst_2 : f32 to vector<8x1xf32>
    %7 = arith.mulf %2, %6 : vector<8x1xf32>
    %cst_3 = arith.constant 3.125000e-02 : f32
    %8 = vector.broadcast %cst_3 : f32 to vector<8x1xf32>
    %9 = arith.mulf %5, %8 : vector<8x1xf32>
    %10 = arith.mulf %7, %7 : vector<8x1xf32>
    %11 = arith.subf %9, %10 : vector<8x1xf32>
    %cst_4 = arith.constant 0.000000e+00 : f32
    %12 = vector.broadcast %cst_4 : f32 to vector<8x1xf32>
    %13 = arith.maximumf %11, %12 : vector<8x1xf32>
    %14 = vector.broadcast %7 : vector<8x1xf32> to vector<8x128xf32>
    %15 = arith.subf %0, %14 : vector<8x128xf32>
    %cst_5 = arith.constant 9.99999974E-6 : f32
    %16 = vector.broadcast %cst_5 : f32 to vector<8x1xf32>
    %17 = arith.addf %13, %16 : vector<8x1xf32>
    %18 = math.rsqrt %17 : vector<8x1xf32>
    %19 = vector.broadcast %18 : vector<8x1xf32> to vector<8x128xf32>
    %20 = arith.mulf %15, %19 : vector<8x128xf32>
    %c0_6 = arith.constant 0 : index
    %c0_7 = arith.constant 0 : index
    %21 = vector.load %arg2[%c0_6, %c0_7] : memref<1x128xf32, #tpu.memory_space<vmem>>, vector<1x128xf32>
    %22 = vector.broadcast %21 : vector<1x128xf32> to vector<8x128xf32>
    %23 = arith.mulf %20, %22 : vector<8x128xf32>
    %c0_8 = arith.constant 0 : index
    %c0_9 = arith.constant 0 : index
    %24 = vector.load %arg3[%c0_8, %c0_9] : memref<1x128xf32, #tpu.memory_space<vmem>>, vector<1x128xf32>
    %25 = vector.broadcast %24 : vector<1x128xf32> to vector<8x128xf32>
    %26 = arith.addf %23, %25 : vector<8x128xf32>
    %27 = arith.truncf %26 : vector<8x128xf32> to vector<8x128xbf16>
    %c0_10 = arith.constant 0 : index
    %c0_11 = arith.constant 0 : index
    %28 = vector.load %arg4[%c0_10, %c0_11] : memref<128x128xbf16, #tpu.memory_space<vmem>>, vector<128x128xbf16>
    %cst_12 = arith.constant dense<0.000000e+00> : vector<8x128xf32>
    %29 = tpu.matmul %27, %28, %cst_12 {dimension_numbers = #tpu.dot_dimension_numbers<[1], [0], [0], [1], [0, 0, 1, 1], [], []>} : vector<8x128xbf16>, vector<128x128xbf16>, vector<8x128xf32> -> vector<8x128xf32>
    %c0_13 = arith.constant 0 : index
    %c0_14 = arith.constant 0 : index
    %30 = vector.load %arg5[%c0_13, %c0_14] : memref<1x128xf32, #tpu.memory_space<vmem>>, vector<1x128xf32>
    %31 = vector.broadcast %30 : vector<1x128xf32> to vector<8x128xf32>
    %32 = arith.addf %29, %31 : vector<8x128xf32>
    %33 = math.tanh %32 : vector<8x128xf32>
    %c0_15 = arith.constant 0 : index
    %c0_16 = arith.constant 0 : index
    %34 = vector.load %arg6[%c0_15, %c0_16] : memref<8x128xf32, #tpu.memory_space<vmem>>, vector<8x128xf32>
    tpu.vector_store %arg6[%c0_15, %c0_16], %33 {strides = array<i32>} : memref<8x128xf32, #tpu.memory_space<vmem>>, vector<8x128xf32>,
    return
  }
  func.func @transform_0(%arg0: i32) -> (i32, i32) {
    %c0_i32 = arith.constant 0 : i32
    %c0_i32_0 = arith.constant 0 : i32
    return %arg0, %c0_i32 : i32, i32
  }
  func.func @transform_1(%arg0: i32) -> (i32, i32) {
    %c0_i32 = arith.constant 0 : i32
    %c0_i32_0 = arith.constant 0 : i32
    %c0_i32_1 = arith.constant 0 : i32
    return %c0_i32, %c0_i32_0 : i32, i32
  }
  func.func @transform_2(%arg0: i32) -> (i32, i32) {
    %c0_i32 = arith.constant 0 : i32
    %c0_i32_0 = arith.constant 0 : i32
    %c0_i32_1 = arith.constant 0 : i32
    return %c0_i32, %c0_i32_0 : i32, i32
  }
  func.func @transform_3(%arg0: i32) -> (i32, i32) {
    %c0_i32 = arith.constant 0 : i32
    %c0_i32_0 = arith.constant 0 : i32
    %c0_i32_1 = arith.constant 0 : i32
    return %c0_i32, %c0_i32_0 : i32, i32
  }
  func.func @transform_4(%arg0: i32) -> (i32, i32) {
    %c0_i32 = arith.constant 0 : i32
    %c0_i32_0 = arith.constant 0 : i32
    %c0_i32_1 = arith.constant 0 : i32
    return %c0_i32, %c0_i32_0 : i32, i32
  }
  func.func @transform_5(%arg0: i32) -> (i32, i32) {
    %c0_i32 = arith.constant 0 : i32
    %c0_i32_0 = arith.constant 0 : i32
    return %arg0, %c0_i32 : i32, i32
  }
}

</mosaic_0001>

<llo_original>
// kernel: pooler_forward.1
$region0: #{pooler_forward.1}
  #allocation0 [shape = 'u32[]', space=smem, size = 0x4, offset = 0x4, fixed_abs, tag = 'smem constant byte address 0x4 - core index']
  #allocation1 [shape = 'u32[144,128]{1,0:T(1,128)}', space=vmem, size = 0x12000, scoped, tag = 'internal scratch']
  %s0 = inlined_call_operand.vmem [shape: f32[8,128], index: 0, kind: input, shape index: {}]
  %s1 = inlined_call_operand.vmem [shape: f32[1,128], index: 1, kind: input, shape index: {}]
  %s2 = inlined_call_operand.vmem [shape: f32[1,128], index: 2, kind: input, shape index: {}]
  %s3 = inlined_call_operand.hbm [shape: bf16[128,128], index: 3, kind: input, shape index: {}]
  %s4 = inlined_call_operand.vmem [shape: f32[1,128], index: 4, kind: input, shape index: {}]
  %s5 = inlined_call_operand.vmem [shape: f32[8,128], index: 5, kind: output, shape index: {}]
  %s6 = sld [smem:[#allocation0]]
  $region34: #{pooler_forward.1} parent=0
    _
  %s8 = ssub.s32 1, %s6
  %s9 = scalar_select 0, %s8, %s6
  $region1: #{pooler_forward.1} parent=0
    #allocation2 [shape = 'u8[32768]{0}', space=vmem, size = 0x8000, scoped, tag = 'input window, operand 3, single buffered']
    #allocation3 [shape = 's32[1]{0}', space=sflag, size = 0x4, scoped, tag = 'scoped memory for pooler_forward.1']
    %10 = vsyncpa [#allocation3], 0
    // Predicated region
    $region2: #{pooler_forward.1} parent=1 // pred_check
      _
    $region3: #{pooler_forward.1} parent=1 // pred_check_branch
      %12 = sbr.rel (0) target = $region5
    $region4: #{pooler_forward.1} parent=1 // pred_region
      _
    $region5: #{pooler_forward.1} parent=1 // pred_fallthru
      _
    // Predicated region
    $region6: #{pooler_forward.1} parent=1 // pred_check
      _
    $region7: #{pooler_forward.1} parent=1 // pred_check_branch
      %14 = sbr.rel (0) target = $region9
    $region8: #{pooler_forward.1} parent=1 // pred_region
      _
    $region9: #{pooler_forward.1} parent=1 // pred_fallthru
      _
    // Predicated region
    $region10: #{pooler_forward.1} parent=1 // pred_check
      _
    $region11: #{pooler_forward.1} parent=1 // pred_check_branch
      %16 = sbr.rel (0) target = $region13
    $region12: #{pooler_forward.1} parent=1 // pred_region
      _
    $region13: #{pooler_forward.1} parent=1 // pred_fallthru
      _
    // Predicated region
    $region14: #{pooler_forward.1} parent=1 // pred_check
      _
    $region15: #{pooler_forward.1} parent=1 // pred_check_branch
      %18 = sbr.rel (0) target = $region17
    $region16: #{pooler_forward.1} parent=1 // pred_region
      %s20 = ssub.s32 1024, 1024
      %21 = vsyncadd [#allocation3], %s20
      %s22 = sshll.u32 [#allocation2], 4
      %s23 = int_to_ptr.vmem [resolvable:$true] %s22
      %28 = dma.hbm_to_vmem [thread:$0]  %s3, 1024, %s23, [#allocation3], 64, 64, 4
    $region17: #{pooler_forward.1} parent=1 // pred_fallthru
      _
    // Predicated region
    $region18: #{pooler_forward.1} parent=1 // pred_check
      _
    $region19: #{pooler_forward.1} parent=1 // pred_check_branch
      %30 = sbr.rel (0) target = $region21
    $region20: #{pooler_forward.1} parent=1 // pred_region
      _
    $region21: #{pooler_forward.1} parent=1 // pred_fallthru
      _
    // Predicated region
    $region22: #{pooler_forward.1} parent=1 // pred_check
      _
    $region23: #{pooler_forward.1} parent=1 // pred_check_branch
      %32 = sbr.rel (0) target = $region25
    $region24: #{pooler_forward.1} parent=1 // pred_region
      %33 = dma.done [#allocation3], 1024
    $region25: #{pooler_forward.1} parent=1 // pred_fallthru
      _
    %v35 = vld [vmem:[%s0] sm:$0xff]
    %36 = vadd.xlane.f32.xlu0 %v35
    %v37 = vpop.xlane.xlu0 %36
    %v38 = vmul.f32 %v35, %v35
    %39 = vadd.xlane.f32.xlu0 %v38
    %v40 = vpop.xlane.xlu0 %39
    %v41 = vmul.f32 %v37, 0.03125
    %v42 = vmul.f32 %v40, 0.03125
    %v43 = vmul.f32 %v41, %v41
    %v44 = vsub.f32 %v42, %v43
    %v45 = vmax.f32 %v44, 0.0
    %v46 = vsub.f32 %v35, %v41
    %v47 = vadd.f32 %v45, 1e-05
    %v48 = vrsqrt.pop %v47
    %v49 = vmul.f32 %v46, %v48
    %v50 = vld [vmem:[%s1] sm:$0x1]
    %v52 = vlaneseq
    %v53 = vshrl.u32 %v52, 7
    %v54 = vsub.s32 0, %v53
    %v55 = vrot.slane %v50, %v54
    %v57 = vmul.f32 %v49, %v55
    %v58 = vld [vmem:[%s2] sm:$0x1]
    %v60 = vlaneseq
    %v61 = vshrl.u32 %v60, 7
    %v62 = vsub.s32 0, %v61
    %v63 = vrot.slane %v58, %v62
    %v65 = vadd.f32 %v57, %v63
    %v66 = vpack.c.bf16 %v65, %v65
    %v67 = vld [vmem:[#allocation2] sm:$0xf]
    %v68 = vld [vmem:[#allocation2 + $0x4] sm:$0xf]
    %v69 = vld [vmem:[#allocation2 + $0x8] sm:$0xf]
    %v70 = vld [vmem:[#allocation2 + $0xc] sm:$0xf]
    %v71 = vld [vmem:[#allocation2 + $0x10] sm:$0xf]
    %v72 = vld [vmem:[#allocation2 + $0x14] sm:$0xf]
    %v73 = vld [vmem:[#allocation2 + $0x18] sm:$0xf]
    %v74 = vld [vmem:[#allocation2 + $0x1c] sm:$0xf]
    %v75 = vld [vmem:[#allocation2 + $0x20] sm:$0xf]
    %v76 = vld [vmem:[#allocation2 + $0x24] sm:$0xf]
    %v77 = vld [vmem:[#allocation2 + $0x28] sm:$0xf]
    %v78 = vld [vmem:[#allocation2 + $0x2c] sm:$0xf]
    %v79 = vld [vmem:[#allocation2 + $0x30] sm:$0xf]
    %v80 = vld [vmem:[#allocation2 + $0x34] sm:$0xf]
    %v81 = vld [vmem:[#allocation2 + $0x38] sm:$0xf]
    %v82 = vld [vmem:[#allocation2 + $0x3c] sm:$0xf]
    %v83 = vld [vmem:[%s4] sm:$0x1]
    %v85 = vlaneseq
    %v86 = vshrl.u32 %v85, 7
    %v87 = vsub.s32 0, %v86
    %v88 = vrot.slane %v83, %v87
    %v106 = vunpack.c.l.b16 %v67
    %v107 = vunpack.c.l.b16 %v68
    %v108 = vunpack.c.l.b16 %v69
    %v109 = vunpack.c.l.b16 %v70
    %v110 = vunpack.c.l.b16 %v71
    %v111 = vunpack.c.l.b16 %v72
    %v112 = vunpack.c.l.b16 %v73
    %v113 = vunpack.c.l.b16 %v74
    %v114 = vunpack.c.l.b16 %v75
    %v115 = vunpack.c.l.b16 %v76
    %v116 = vunpack.c.l.b16 %v77
    %v117 = vunpack.c.l.b16 %v78
    %v118 = vunpack.c.l.b16 %v79
    %v119 = vunpack.c.l.b16 %v80
    %v120 = vunpack.c.l.b16 %v81
    %v121 = vunpack.c.l.b16 %v82
    %v122 = vpack.c.b16 %v107, %v106
    %v123 = vpack.c.b16 %v109, %v108
    %v124 = vpack.c.b16 %v111, %v110
    %v125 = vpack.c.b16 %v113, %v112
    %v126 = vpack.c.b16 %v115, %v114
    %v127 = vpack.c.b16 %v117, %v116
    %v128 = vpack.c.b16 %v119, %v118
    %v129 = vpack.c.b16 %v121, %v120
    %138 = vmatprep.subr.bf16.mxu0 0
    %139 = vmatpush1.bf16.msra.mxu0 %v122
    %140 = vmatprep.subr.bf16.mxu0 0
    %141 = vmatpush1.bf16.msra.mxu0 %v123
    %142 = vmatprep.subr.bf16.mxu0 0
    %143 = vmatpush1.bf16.msra.mxu0 %v124
    %144 = vmatprep.subr.bf16.mxu0 0
    %145 = vmatpush1.bf16.msra.mxu0 %v125
    %146 = vmatprep.subr.bf16.mxu0 0
    %147 = vmatpush1.bf16.msra.mxu0 %v126
    %148 = vmatprep.subr.bf16.mxu0 0
    %149 = vmatpush1.bf16.msra.mxu0 %v127
    %150 = vmatprep.subr.bf16.mxu0 0
    %151 = vmatpush1.bf16.msra.mxu0 %v128
    %152 = vmatprep.subr.bf16.mxu0 0
    %153 = vmatpush1.bf16.msra.mxu0 %v129
    %154 = vmatprep.subr.bf16.mxu0 0
    %155 = vmatpush1.bf16.msra.mxu0 0
    %156 = vmatprep.subr.bf16.mxu0 0
    %157 = vmatpush1.bf16.msra.mxu0 0
    %158 = vmatprep.subr.bf16.mxu0 0
    %159 = vmatpush1.bf16.msra.mxu0 0
    %160 = vmatprep.subr.bf16.mxu0 0
    %161 = vmatpush1.bf16.msra.mxu0 0
    %162 = vmatprep.subr.bf16.mxu0 0
    %163 = vmatpush1.bf16.msra.mxu0 0
    %164 = vmatprep.subr.bf16.mxu0 0
    %165 = vmatpush1.bf16.msra.mxu0 0
    %166 = vmatprep.subr.bf16.mxu0 0
    %167 = vmatpush1.bf16.msra.mxu0 0
    %168 = vmatprep.subr.bf16.mxu0 0
    %169 = vmatpush1.bf16.msra.mxu0 0
    %170 = vmatprep.mubr.bf16.mxu0 0
    %171 = vmatmul.mubr.bf16.gmra.mrb[0].mxu0 %v66
    %v172 = vpop.f32.mrb[0].mxu0
    %v173 = vadd.f32 %v88, %v172
    %v174 = vpop.f32.mrb[0].mxu0
    %v175 = vpop.f32.mrb[0].mxu0
    %v176 = vpop.f32.mrb[0].mxu0
    %177 = vdwg.mxu0
    %v178 = vtanh.pop %v173
    %179 = vst [vmem:[%s5] sm:$0xff] %v178
    // Predicated region
    $region26: #{pooler_forward.1} parent=1 // pred_check
      _
    $region27: #{pooler_forward.1} parent=1 // pred_check_branch
      %181 = sbr.rel (0) target = $region29
    $region28: #{pooler_forward.1} parent=1 // pred_region
      _
    $region29: #{pooler_forward.1} parent=1 // pred_fallthru
      _
    // Predicated region
    $region30: #{pooler_forward.1} parent=1 // pred_check
      _
    $region31: #{pooler_forward.1} parent=1 // pred_check_branch
      %183 = sbr.rel (0) target = $region33
    $region32: #{pooler_forward.1} parent=1 // pred_region
      _
    $region33: #{pooler_forward.1} parent=1 // pred_fallthru
      _
    %184 = vsyncpa [#allocation3], 1

</llo_original>
